<compile_context>
chip_gen: v6e
topology: v6e:2x2x1
jax: 0.10.0
libtpu: 0.0.40
codegen_flags: <defaults>
</compile_context>

<pallas_src>
import jax
import jax.numpy as jnp
import numpy as np
from jax import lax
from jax.experimental import pallas as pl
from jax.experimental.pallas import tpu as pltpu


def _pick_tile(total, target, quantum):
    """Largest tile <= target that divides `total` and is a multiple of
    `quantum` (128 for lane/last dims).  Falls back to the full extent when
    `total` is not quantum-aligned (full-dim blocks are always legal)."""
    if total % quantum != 0:
        return total
    t = min(total, max(quantum, (target // quantum) * quantum))
    while total % t != 0:
        t -= quantum
    return t


def _aspp_matmul_kernel(x_ref, w_ref, shift_ref, o_ref, acc_ref):
    """One (batch, spatial-tile) output block; reduction over K chunks (axis 2).

    x_ref     : (1, Tk, Thw)    bf16 im2col activations (K-chunk x spatial tile)
    w_ref     : (Cout, Tk)      bf16 conv weights with BN scale folded in
    shift_ref : (Cout, 1)       f32 folded BN shift
    o_ref     : (1, Cout, Thw)  f32 output block (lane-dense along spatial)
    acc_ref   : (Cout, Thw)     f32 VMEM accumulator scratch
    """
    k = pl.program_id(2)

    @pl.when(k == 0)
    def _():
        acc_ref[...] = jnp.zeros_like(acc_ref)

    # Single MXU matmul per block: (Cout, Tk) @ (Tk, Thw) with f32 accumulation.
    acc_ref[...] += jnp.dot(w_ref[...], x_ref[0],
                            preferred_element_type=jnp.float32)

    @pl.when(k == pl.num_programs(2) - 1)
    def _():
        y = acc_ref[...] + shift_ref[...]          # BN shift (scale already in w)
        o_ref[0] = jnp.maximum(y, 0.0).astype(o_ref.dtype)   # ReLU, lane-dense store


def aspp_module_forward(x_nchw, weight, bn_gamma, bn_beta, bn_mean, bn_var,
                        *, padding, dilation, eps=1e-5,
                        hw_tile_target=512, k_tile_target=2048,
                        compute_dtype=jnp.bfloat16):
    """Forward pass of _ASPPModule (eval-mode BN).

    x_nchw : (N, Cin, H, W) float32
    weight : (Cout, Cin, KH, KW) float32  (PyTorch conv weight layout)
    Returns (N, Cout, H_out, W_out) float32.
    """
    N, Cin, H, W = x_nchw.shape
    Cout, _, KH, KW = weight.shape

    # Output spatial size (stride=1).
    H_out = H + 2 * padding - dilation * (KH - 1)
    W_out = W + 2 * padding - dilation * (KW - 1)
    assert H_out > 0 and W_out > 0
    HW = H_out * W_out
    K = KH * KW * Cin

    # ---- BN folding (eval mode): scale into weights, shift stays in-kernel ----
    scale = bn_gamma / jnp.sqrt(bn_var + eps)                        # (Cout,)
    shift = (bn_beta - bn_mean * scale).reshape(Cout, 1).astype(jnp.float32)

    # (Cout, Cin, KH, KW) -> (Cout, K) with K index = (kh*KW + kw)*Cin + cin.
    w2 = jnp.transpose(weight, (0, 2, 3, 1)).reshape(Cout, K)
    w2 = (w2 * scale[:, None]).astype(compute_dtype)

    # ---- im2col in plain JAX: contiguous contraction axis for the kernel ----
    x_pad = jnp.pad(x_nchw, ((0, 0), (0, 0),
                             (padding, padding), (padding, padding)))
    cols = []
    for kh in range(KH):
        for kw in range(KW):
            win = lax.slice(
                x_pad,
                (0, 0, kh * dilation, kw * dilation),
                (N, Cin, kh * dilation + H_out, kw * dilation + W_out))
            cols.append(win.reshape(N, Cin, HW))
    x_col = jnp.concatenate(cols, axis=1).astype(compute_dtype)      # (N, K, HW)

    # ---- tiling ----
    Thw = _pick_tile(HW, hw_tile_target, 128)   # spatial (lane) tile
    Tk = _pick_tile(K, k_tile_target, 128)      # contraction chunk
    grid = (N, HW // Thw, K // Tk)

    out = pl.pallas_call(
        _aspp_matmul_kernel,
        out_shape=jax.ShapeDtypeStruct((N, Cout, HW), jnp.float32),
        grid_spec=pltpu.PrefetchScalarGridSpec(
            num_scalar_prefetch=0,
            grid=grid,
            in_specs=[
                pl.BlockSpec((1, Tk, Thw), lambda n, p, kk: (n, kk, p)),
                pl.BlockSpec((Cout, Tk), lambda n, p, kk: (0, kk)),
                pl.BlockSpec((Cout, 1), lambda n, p, kk: (0, 0)),
            ],
            out_specs=pl.BlockSpec((1, Cout, Thw), lambda n, p, kk: (n, 0, p)),
            scratch_shapes=[pltpu.VMEM((Cout, Thw), jnp.float32)],
        ),
        compiler_params=pltpu.CompilerParams(
            dimension_semantics=("parallel", "parallel", "arbitrary")),
    )(x_col, w2, shift)

    # (N, Cout, H_out*W_out) is already channel-major: just reshape to NCHW.
    return out.reshape(N, Cout, H_out, W_out)


def _reference_forward(x_nchw, weight, bn_gamma, bn_beta, bn_mean, bn_var,
                       *, padding, dilation, eps=1e-5,
                       compute_dtype=jnp.bfloat16):
    """Pure-JAX reference mirroring the kernel numerics (bf16 operands, f32
    accumulation, BN scale folded into the weights)."""
    scale = bn_gamma / jnp.sqrt(bn_var + eps)
    shift = bn_beta - bn_mean * scale
    w_eff = (weight * scale[:, None, None, None]
             ).astype(compute_dtype).astype(jnp.float32)
    x_c = x_nchw.astype(compute_dtype).astype(jnp.float32)
    y = lax.conv_general_dilated(
        x_c, w_eff,
        window_strides=(1, 1),
        padding=[(padding, padding), (padding, padding)],
        rhs_dilation=(dilation, dilation),
        dimension_numbers=("NCHW", "OIHW", "NCHW"),
        preferred_element_type=jnp.float32)
    return jnp.maximum(y + shift.reshape(1, -1, 1, 1), 0.0)


if __name__ == "__main__":
    # Module config (typical ASPP branch): 3x3 conv, dilation 2.
    N, Cin, H, W = 2, 4, 16, 16
    Cout, KH, KW = 8, 3, 3
    padding, dilation = 2, 2

    key = jax.random.PRNGKey(0)
    kx, kw = jax.random.split(key)

    x = jax.random.normal(kx, (N, Cin, H, W), dtype=jnp.float32)

    # kaiming_normal_ (fan_in, gain=sqrt(2)) deterministic init.
    fan_in = Cin * KH * KW
    std = float(np.sqrt(2.0 / fan_in))
    weight = jax.random.normal(kw, (Cout, Cin, KH, KW), dtype=jnp.float32) * std

    # BatchNorm params as in _init_weight: weight=1, bias=0 (+ default running stats).
    bn_gamma = jnp.ones((Cout,), jnp.float32)
    bn_beta = jnp.zeros((Cout,), jnp.float32)
    bn_mean = jnp.zeros((Cout,), jnp.float32)
    bn_var = jnp.ones((Cout,), jnp.float32)

    # Small spatial-tile target so the test exercises the multi-tile grid path.
    out = aspp_module_forward(x, weight, bn_gamma, bn_beta, bn_mean, bn_var,
                              padding=padding, dilation=dilation,
                              hw_tile_target=128)
    out = jax.block_until_ready(out)

    ref = _reference_forward(x, weight, bn_gamma, bn_beta, bn_mean, bn_var,
                             padding=padding, dilation=dilation)
    ref = jax.block_until_ready(ref)

    assert out.shape == (N, Cout, H, W), out.shape
    np.testing.assert_allclose(np.asarray(out), np.asarray(ref),
                               rtol=1e-4, atol=1e-4)
    print("KERNEL_OK")
</pallas_src>

<mosaic_0001>
module attributes {stable_mosaic.version = 11 : i64} {
  func.func @_aspp_matmul_kernel(%arg0: i32, %arg1: i32, %arg2: i32, %arg3: memref<1x36x128xbf16, #tpu.memory_space<vmem>>, %arg4: memref<8x36xbf16, #tpu.memory_space<vmem>>, %arg5: memref<8x1xf32, #tpu.memory_space<vmem>>, %arg6: memref<1x8x128xf32, #tpu.memory_space<vmem>>, %arg7: memref<8x128xf32, #tpu.memory_space<vmem>>) attributes {dimension_semantics = [#tpu.dimension_semantics<parallel>, #tpu.dimension_semantics<parallel>, #tpu.dimension_semantics<arbitrary>], iteration_bounds = array<i64: 2, 2, 1>, scalar_prefetch = 0 : i64, scratch_operands = 1 : i64, tpu.core_type = #tpu.core_type<tc>, window_params = [{transform_indices = @transform_0, window_bounds = array<i64: 1, 36, 128>}, {transform_indices = @transform_1, window_bounds = array<i64: 8, 36>}, {pipeline_mode = #tpu.pipeline_mode<synchronous>, transform_indices = @transform_2, window_bounds = array<i64: 8, 1>}, {transform_indices = @transform_3, window_bounds = array<i64: 1, 8, 128>}]} {
    %c0_i32 = arith.constant 0 : i32
    %0 = arith.cmpi eq, %arg2, %c0_i32 : i32
    %1 = arith.extui %0 : i1 to i32
    %c0_i32_0 = arith.constant 0 : i32
    %2 = arith.cmpi ne, %1, %c0_i32_0 : i32
    scf.if %2 {
      %cst_11 = arith.constant 0.000000e+00 : f32
      %13 = vector.broadcast %cst_11 : f32 to vector<8x128xf32>
      %c0_12 = arith.constant 0 : index
      %c0_13 = arith.constant 0 : index
      %14 = vector.load %arg7[%c0_12, %c0_13] : memref<8x128xf32, #tpu.memory_space<vmem>>, vector<8x128xf32>
      tpu.vector_store %arg7[%c0_12, %c0_13], %13 {strides = array<i32>} : memref<8x128xf32, #tpu.memory_space<vmem>>, vector<8x128xf32>,
    } else {
    }
    %c0 = arith.constant 0 : index
    %c0_1 = arith.constant 0 : index
    %3 = vector.load %arg7[%c0, %c0_1] : memref<8x128xf32, #tpu.memory_space<vmem>>, vector<8x128xf32>
    %c0_2 = arith.constant 0 : index
    %c0_3 = arith.constant 0 : index
    %4 = vector.load %arg4[%c0_2, %c0_3] : memref<8x36xbf16, #tpu.memory_space<vmem>>, vector<8x36xbf16>
    %c0_4 = arith.constant 0 : index
    %c0_5 = arith.constant 0 : index
    %c0_6 = arith.constant 0 : index
    %5 = vector.load %arg3[%c0_4, %c0_5, %c0_6] : memref<1x36x128xbf16, #tpu.memory_space<vmem>>, vector<1x36x128xbf16>
    %6 = vector.shape_cast %5 : vector<1x36x128xbf16> to vector<36x128xbf16>
    %cst = arith.constant dense<0.000000e+00> : vector<8x128xf32>
    %7 = tpu.matmul %4, %6, %cst {dimension_numbers = #tpu.dot_dimension_numbers<[1], [0], [0], [1], [0, 0, 1, 1], [], []>} : vector<8x36xbf16>, vector<36x128xbf16>, vector<8x128xf32> -> vector<8x128xf32>
    %8 = arith.addf %3, %7 : vector<8x128xf32>
    %c0_7 = arith.constant 0 : index
    %c0_8 = arith.constant 0 : index
    %9 = vector.load %arg7[%c0_7, %c0_8] : memref<8x128xf32, #tpu.memory_space<vmem>>, vector<8x128xf32>
    tpu.vector_store %arg7[%c0_7, %c0_8], %8 {strides = array<i32>} : memref<8x128xf32, #tpu.memory_space<vmem>>, vector<8x128xf32>,
    %c0_i32_9 = arith.constant 0 : i32
    %10 = arith.cmpi eq, %arg2, %c0_i32_9 : i32
    %11 = arith.extui %10 : i1 to i32
    %c0_i32_10 = arith.constant 0 : i32
    %12 = arith.cmpi ne, %11, %c0_i32_10 : i32
    scf.if %12 {
      %c0_11 = arith.constant 0 : index
      %c0_12 = arith.constant 0 : index
      %13 = vector.load %arg7[%c0_11, %c0_12] : memref<8x128xf32, #tpu.memory_space<vmem>>, vector<8x128xf32>
      %c0_13 = arith.constant 0 : index
      %c0_14 = arith.constant 0 : index
      %14 = vector.load %arg5[%c0_13, %c0_14] : memref<8x1xf32, #tpu.memory_space<vmem>>, vector<8x1xf32>
      %15 = vector.broadcast %14 : vector<8x1xf32> to vector<8x128xf32>
      %16 = arith.addf %13, %15 : vector<8x128xf32>
      %cst_15 = arith.constant 0.000000e+00 : f32
      %17 = vector.broadcast %cst_15 : f32 to vector<8x128xf32>
      %18 = arith.maximumf %16, %17 : vector<8x128xf32>
      %c0_16 = arith.constant 0 : index
      %c0_17 = arith.constant 0 : index
      %c0_18 = arith.constant 0 : index
      %19 = vector.load %arg6[%c0_16, %c0_17, %c0_18] : memref<1x8x128xf32, #tpu.memory_space<vmem>>, vector<1x8x128xf32>
      %20 = vector.shape_cast %19 : vector<1x8x128xf32> to vector<8x128xf32>
      %21 = vector.shape_cast %18 : vector<8x128xf32> to vector<1x8x128xf32>
      tpu.vector_store %arg6[%c0_16, %c0_17, %c0_18], %21 {strides = array<i32>} : memref<1x8x128xf32, #tpu.memory_space<vmem>>, vector<1x8x128xf32>,
    } else {
    }
    return
  }
  func.func @transform_0(%arg0: i32, %arg1: i32, %arg2: i32) -> (i32, i32, i32) {
    %c0_i32 = arith.constant 0 : i32
    return %arg0, %arg2, %arg1 : i32, i32, i32
  }
  func.func @transform_1(%arg0: i32, %arg1: i32, %arg2: i32) -> (i32, i32) {
    %c0_i32 = arith.constant 0 : i32
    %c0_i32_0 = arith.constant 0 : i32
    return %c0_i32, %arg2 : i32, i32
  }
  func.func @transform_2(%arg0: i32, %arg1: i32, %arg2: i32) -> (i32, i32) {
    %c0_i32 = arith.constant 0 : i32
    %c0_i32_0 = arith.constant 0 : i32
    %c0_i32_1 = arith.constant 0 : i32
    return %c0_i32, %c0_i32_0 : i32, i32
  }
  func.func @transform_3(%arg0: i32, %arg1: i32, %arg2: i32) -> (i32, i32, i32) {
    %c0_i32 = arith.constant 0 : i32
    %c0_i32_0 = arith.constant 0 : i32
    return %arg0, %c0_i32, %arg1 : i32, i32, i32
  }
}

</mosaic_0001>

<llo_original>
// kernel: tpu_custom_call.1
$region0: #{tpu_custom_call.1}
  #allocation0 [shape = 'u32[]', space=smem, size = 0x4, offset = 0x4, fixed_abs, tag = 'smem constant byte address 0x4 - core index']
  #allocation1 [shape = 'u32[144,128]{1,0:T(1,128)}', space=vmem, size = 0x12000, scoped, tag = 'internal scratch']
  #allocation2 [shape = 'f32[8,128]{1,0:T(8,128)}', space=vmem, size = 0x1000, scoped, tag = 'scratch operand']
  %s0 = inlined_call_operand.vmem [shape: bf16[2,36,256], index: 0, kind: input, shape index: {}]
  %s1 = inlined_call_operand.vmem [shape: bf16[8,36], index: 1, kind: input, shape index: {}]
  %s2 = inlined_call_operand.vmem [shape: f32[8,1], index: 2, kind: input, shape index: {}]
  %s3 = inlined_call_operand.hbm [shape: f32[2,8,256], index: 3, kind: output, shape index: {}]
  %s4 = sld [smem:[#allocation0]]
  $region94: #{tpu_custom_call.1} parent=0
    _
  %s6 = ssub.s32 1, %s4
  %s7 = scalar_select 0, %s6, %s4
  $region1: #{tpu_custom_call.1} parent=0
    #allocation3 [shape = 'u8[20480]{0}', space=vmem, size = 0x5000, scoped, tag = 'input window, operand 0']
    #allocation4 [shape = 'u8[8192]{0}', space=vmem, size = 0x2000, scoped, tag = 'output window, operand 0']
    #allocation5 [shape = 's32[2]{0}', space=sflag, size = 0x8, scoped, tag = 'scoped memory for tpu_custom_call.1']
    %8 = vsyncpa [#allocation5], 0
    %s9 = scalar_lea.sflag [#allocation5], 1
    %10 = vsyncpa %s9, 0
    loop: start=0, step=1, limit=6
    $region2: #{tpu_custom_call.1} parent=1 // loop_pre_header
      _
    $region3: #{tpu_custom_call.1} parent=1 // loop_header
      %s12 = sphi 0, %s16
      %p13 = scmp.ge.s32.totalorder %s12, 6
      %s19 = sphi 0, %s38
      %s20 = sphi 0, %s34
      %s21 = sphi 0, %s30
      %s22 = sphi 0, %s19
      %s23 = sphi 0, %s20
      %s24 = sphi 0, %s21
      %s25 = sphi 0, %s22
      %s26 = sphi 0, %s23
      %s27 = sphi 0, %s24
      %s45 = sphi 0, %s47
      %s48 = sphi 0, %s45
      %s49 = sphi 0, %s48
      %s65 = sphi 0, %s49
      %s71 = sphi 0, %s73
      %s74 = sphi 0, %s71
      %s75 = sphi 0, %s74
      %s91 = sphi 0, %s75
      %s95 = sphi 0, %s95
      %s97 = sphi 0, %s95
      %s98 = sphi 0, %s97
      %s112 = sphi 0, %s98
      %s120 = sphi 0, %s122
      %s123 = sphi 0, %s120
      %s124 = sphi 0, %s123
      %s140 = sphi 0, %s124
    $region4: #{tpu_custom_call.1} parent=1 // loop_header_branch
      %15 = sbr.rel (%p13) target = $region8
    $region5: #{tpu_custom_call.1} parent=1 // loop_body
      %s17 = ssub.s32 %s12, 1
      %s18 = ssub.s32 %s12, 2
      %s28 = sadd.s32 1, %s21
      %p29 = scmp.ge.s32.totalorder %s28, 1
      %s30 = scalar_select %p29, 0, %s28
      %s31 = sadd.s32 1, %s20
      %s32 = scalar_select %p29, %s31, %s20
      %p33 = scmp.ge.s32.totalorder %s32, 2
      %s34 = scalar_select %p33, 0, %s32
      %s35 = sadd.s32 1, %s19
      %s36 = scalar_select %p33, %s35, %s19
      %p37 = scmp.ge.s32.totalorder %s36, 2
      %s38 = scalar_select %p37, 0, %s36
      %s39 = ssub.s32 %s19, %s38
      %s40 = ssub.s32 %s21, %s30
      %s41 = sor.u32 %s39, %s40
      %s42 = ssub.s32 %s20, %s34
      %s43 = sor.u32 %s41, %s42
      %p44 = scmp.eq.s32.totalorder %s43, 0
      %s46 = sadd.s32 %s45, 1
      %s47 = scalar_select %p44, %s45, %s46
      %p50 = pneg %p44
      %p51 = scmp.eq.s32.totalorder %s12, 3
      %p52 = por %p50, %p51
      %p53 = scmp.ne.s32.totalorder %s45, %s48
      %p54 = scmp.eq.s32.totalorder %s12, 0
      %p55 = por %p53, %p54
      %p56 = scmp.ne.s32.totalorder %s45, %s48
      %p57 = scmp.eq.s32.totalorder %s17, 3
      %p58 = por %p56, %p57
      %p59 = scmp.ne.s32.totalorder %s48, %s49
      %p60 = scmp.eq.s32.totalorder %s17, 0
      %p61 = por %p59, %p60
      %p62 = scmp.ne.s32.totalorder %s48, %s49
      %p63 = scmp.eq.s32.totalorder %s18, 3
      %p64 = por %p62, %p63
      %p66 = scmp.ne.s32.totalorder %s49, %s65
      %p67 = scmp.eq.s32.totalorder %s18, 0
      %p68 = por %p66, %p67
      %s69 = ssub.s32 %s21, %s30
      %p70 = scmp.eq.s32.totalorder %s69, 0
      %s72 = sadd.s32 %s71, 1
      %s73 = scalar_select %p70, %s71, %s72
      %p76 = pneg %p70
      %p77 = scmp.eq.s32.totalorder %s12, 3
      %p78 = por %p76, %p77
      %p79 = scmp.ne.s32.totalorder %s71, %s74
      %p80 = scmp.eq.s32.totalorder %s12, 0
      %p81 = por %p79, %p80
      %p82 = scmp.ne.s32.totalorder %s71, %s74
      %p83 = scmp.eq.s32.totalorder %s17, 3
      %p84 = por %p82, %p83
      %p85 = scmp.ne.s32.totalorder %s74, %s75
      %p86 = scmp.eq.s32.totalorder %s17, 0
      %p87 = por %p85, %p86
      %p88 = scmp.ne.s32.totalorder %s74, %s75
      %p89 = scmp.eq.s32.totalorder %s18, 3
      %p90 = por %p88, %p89
      %p92 = scmp.ne.s32.totalorder %s75, %s91
      %p93 = scmp.eq.s32.totalorder %s18, 0
      %p94 = por %p92, %p93
      %s96 = sadd.s32 %s95, 1
      %p99 = scmp.eq.s32.totalorder %s12, 3
      %p100 = scmp.ne.s32.totalorder %s95, %s97
      %p101 = scmp.eq.s32.totalorder %s12, 0
      %p102 = por %p100, %p101
      %p103 = scmp.ne.s32.totalorder %s95, %s97
      %p104 = scmp.eq.s32.totalorder %s17, 3
      %p105 = por %p103, %p104
      %p106 = scmp.ne.s32.totalorder %s97, %s98
      %p107 = scmp.eq.s32.totalorder %s17, 0
      %p108 = por %p106, %p107
      %p109 = scmp.ne.s32.totalorder %s97, %s98
      %p110 = scmp.eq.s32.totalorder %s18, 3
      %p111 = por %p109, %p110
      %p113 = scmp.ne.s32.totalorder %s98, %s112
      %p114 = scmp.eq.s32.totalorder %s18, 0
      %p115 = por %p113, %p114
      %s116 = ssub.s32 %s19, %s38
      %s117 = ssub.s32 %s20, %s34
      %s118 = sor.u32 %s116, %s117
      %p119 = scmp.eq.s32.totalorder %s118, 0
      %s121 = sadd.s32 %s120, 1
      %s122 = scalar_select %p119, %s120, %s121
      %p125 = pneg %p119
      %p126 = scmp.eq.s32.totalorder %s12, 3
      %p127 = por %p125, %p126
      %p128 = scmp.ne.s32.totalorder %s120, %s123
      %p129 = scmp.eq.s32.totalorder %s12, 0
      %p130 = por %p128, %p129
      %p131 = scmp.ne.s32.totalorder %s120, %s123
      %p132 = scmp.eq.s32.totalorder %s17, 3
      %p133 = por %p131, %p132
      %p134 = scmp.ne.s32.totalorder %s123, %s124
      %p135 = scmp.eq.s32.totalorder %s17, 0
      %p136 = por %p134, %p135
      %p137 = scmp.ne.s32.totalorder %s123, %s124
      %p138 = scmp.eq.s32.totalorder %s18, 3
      %p139 = por %p137, %p138
      %p141 = scmp.ne.s32.totalorder %s124, %s140
      %p142 = scmp.eq.s32.totalorder %s18, 0
      %p143 = por %p141, %p142
      %p144 = scmp.le.s32.totalorder 1, %s12
      %p145 = scmp.lt.s32.totalorder %s12, 5
      %p146 = pnand %p144, %p145
      %p147 = pneg %p146
      // Predicated region
      $region9: #{tpu_custom_call.1} parent=5 // pred_check
        _
      $region10: #{tpu_custom_call.1} parent=5 // pred_check_branch
        %149 = sbr.rel (%p146) target = $region12
      $region11: #{tpu_custom_call.1} parent=5 // pred_region
        %s150 = ssub.s32 %s12, 1
        // Predicated region
        $region13: #{tpu_custom_call.1} parent=11 // pred_check
          %p151 = pneg %p87
        $region14: #{tpu_custom_call.1} parent=11 // pred_check_branch
          %153 = sbr.rel (%p151) target = $region16
        $region15: #{tpu_custom_call.1} parent=11 // pred_region
          %p154 = scmp.lt.s32.totalorder %s24, 0
          %s155 = scalar_select %p154, %s24, 0
          %s156 = smul.addr %s155, 4
          %s157 = scalar_lea.vmem %s1, %s156
        $region16: #{tpu_custom_call.1} parent=11 // pred_fallthru
          _
        // Predicated region
        $region17: #{tpu_custom_call.1} parent=11 // pred_check
          %p158 = pneg %p108
        $region18: #{tpu_custom_call.1} parent=11 // pred_check_branch
          %160 = sbr.rel (%p158) target = $region20
        $region19: #{tpu_custom_call.1} parent=11 // pred_region
          _
        $region20: #{tpu_custom_call.1} parent=11 // pred_fallthru
          _
      $region12: #{tpu_custom_call.1} parent=5 // pred_fallthru
        _
      %p161 = scmp.lt.s32.totalorder %s12, 4
      // Predicated region
      $region21: #{tpu_custom_call.1} parent=5 // pred_check
        %p162 = pneg %p161
      $region22: #{tpu_custom_call.1} parent=5 // pred_check_branch
        %164 = sbr.rel (%p162) target = $region24
      $region23: #{tpu_custom_call.1} parent=5 // pred_region
        // Predicated region
        $region25: #{tpu_custom_call.1} parent=23 // pred_check
          %p165 = pneg %p55
        $region26: #{tpu_custom_call.1} parent=23 // pred_check_branch
          %167 = sbr.rel (%p165) target = $region28
        $region27: #{tpu_custom_call.1} parent=23 // pred_region
          %s168 = sand.u32 %s45, 1
          %s169 = sand.u32 %s45, 1
          %s170 = smul.addr %s169, 20
          %s171 = scalar_lea.vmem [#allocation3], %s170
          %s172 = smul.u32 5, %s21
          %s173 = smul.addr %s172, 2
          %s174 = sadd.s32 %s20, %s173
          %s175 = smul.addr %s19, 10
          %s176 = sadd.s32 %s174, %s175
          %s177 = smul.addr %s176, 4
          %s178 = scalar_lea.vmem %s0, %s177
          // Predicated region
          $region29: #{tpu_custom_call.1} parent=27 // pred_check
            _
          $region30: #{tpu_custom_call.1} parent=27 // pred_check_branch
            %180 = sbr.rel (0) target = $region32
          $region31: #{tpu_custom_call.1} parent=27 // pred_region
            // Predicated region
            $region33: #{tpu_custom_call.1} parent=31 // pred_check
              _
            $region34: #{tpu_custom_call.1} parent=31 // pred_check_branch
              %182 = sbr.rel target = $region36
            $region35: #{tpu_custom_call.1} parent=31 // pred_region
              // Predicated region
              $region48: #{tpu_custom_call.1} parent=35 // pred_check
                _
              $region49: #{tpu_custom_call.1} parent=35 // pred_check_branch
                %206 = sbr.rel (0) target = $region51
              $region50: #{tpu_custom_call.1} parent=35 // pred_region
                loop: start=0, step=1, limit=1
                $region52: #{tpu_custom_call.1} parent=50 // loop_pre_header
                  _
                $region53: #{tpu_custom_call.1} parent=50 // loop_header
                  %s208 = sphi 0, %s212
                  %p209 = scmp.ge.s32.totalorder %s208, 1
                  %s213 = sphi %s178, %s178
                  %s214 = sphi %s171, %s171
                $region54: #{tpu_custom_call.1} parent=50 // loop_header_branch
                  %211 = sbr.rel (%p209) target = $region58
                $region55: #{tpu_custom_call.1} parent=50 // loop_body
                  _
                $region56: #{tpu_custom_call.1} parent=50 // loop_footer
                  %s212 = sadd.s32 1, %s208
                $region57: #{tpu_custom_call.1} parent=50 // loop_footer_branch
                  %207 = sbr.rel target = $region53
                $region58: #{tpu_custom_call.1} parent=50 // loop_exit
                  _
                %s216 = ssub.s32 16, 1
                loop: start=0, step=1, limit=1
                $region59: #{tpu_custom_call.1} parent=50 // loop_pre_header
                  _
                $region60: #{tpu_custom_call.1} parent=50 // loop_header
                  %s218 = sphi 0, %s222
                  %p219 = scmp.ge.s32.totalorder %s218, 1
                  %s223 = sphi %s178, %s178
                  %s224 = sphi %s171, %s171
                $region61: #{tpu_custom_call.1} parent=50 // loop_header_branch
                  %221 = sbr.rel (%p219) target = $region65
                $region62: #{tpu_custom_call.1} parent=50 // loop_body
                  %v225 = vld [vmem:[%s223] sm:%s216]
                  %226 = vst [vmem:[%s224] sm:%s216] %v225
                  %v227 = vld [vmem:[%s223 + $0x8] sm:%s216]
                  %228 = vst [vmem:[%s224 + $0x4] sm:%s216] %v227
                  %v229 = vld [vmem:[%s223 + $0x10] sm:%s216]
                  %230 = vst [vmem:[%s224 + $0x8] sm:%s216] %v229
                  %v231 = vld [vmem:[%s223 + $0x18] sm:%s216]
                  %232 = vst [vmem:[%s224 + $0xc] sm:%s216] %v231
                  %v233 = vld [vmem:[%s223 + $0x20] sm:%s216]
                  %234 = vst [vmem:[%s224 + $0x10] sm:%s216] %v233
                $region63: #{tpu_custom_call.1} parent=50 // loop_footer
                  %s222 = sadd.s32 1, %s218
                $region64: #{tpu_custom_call.1} parent=50 // loop_footer_branch
                  %217 = sbr.rel target = $region60
                $region65: #{tpu_custom_call.1} parent=50 // loop_exit
                  _
              $region51: #{tpu_custom_call.1} parent=35 // pred_fallthru
                _
            $region36: #{tpu_custom_call.1} parent=31 // pred_fallthru
              _
            // Predicated region
            $region37: #{tpu_custom_call.1} parent=31 // pred_check
              _
            $region38: #{tpu_custom_call.1} parent=31 // pred_check_branch
              %184 = sbr.rel (0) target = $region40
            $region39: #{tpu_custom_call.1} parent=31 // pred_region
              %s186 = ssub.s32 16, 1
              loop: start=0, step=1, limit=1
              $region41: #{tpu_custom_call.1} parent=39 // loop_pre_header
                _
              $region42: #{tpu_custom_call.1} parent=39 // loop_header
                %s188 = sphi 0, %s192
                %p189 = scmp.ge.s32.totalorder %s188, 1
                %s193 = sphi %s178, %s178
                %s194 = sphi %s171, %s171
              $region43: #{tpu_custom_call.1} parent=39 // loop_header_branch
                %191 = sbr.rel (%p189) target = $region47
              $region44: #{tpu_custom_call.1} parent=39 // loop_body
                %v195 = vld [vmem:[%s193] sm:%s186]
                %196 = vst [vmem:[%s194] sm:%s186] %v195
                %v197 = vld [vmem:[%s193 + $0x8] sm:%s186]
                %198 = vst [vmem:[%s194 + $0x4] sm:%s186] %v197
                %v199 = vld [vmem:[%s193 + $0x10] sm:%s186]
                %200 = vst [vmem:[%s194 + $0x8] sm:%s186] %v199
                %v201 = vld [vmem:[%s193 + $0x18] sm:%s186]
                %202 = vst [vmem:[%s194 + $0xc] sm:%s186] %v201
                %v203 = vld [vmem:[%s193 + $0x20] sm:%s186]
                %204 = vst [vmem:[%s194 + $0x10] sm:%s186] %v203
              $region45: #{tpu_custom_call.1} parent=39 // loop_footer
                %s192 = sadd.s32 1, %s188
              $region46: #{tpu_custom_call.1} parent=39 // loop_footer_branch
                %187 = sbr.rel target = $region42
              $region47: #{tpu_custom_call.1} parent=39 // loop_exit
                _
            $region40: #{tpu_custom_call.1} parent=31 // pred_fallthru
              _
          $region32: #{tpu_custom_call.1} parent=27 // pred_fallthru
            _
          %235 = vnop
        $region28: #{tpu_custom_call.1} parent=23 // pred_fallthru
          _
      $region24: #{tpu_custom_call.1} parent=5 // pred_fallthru
        _
      %p236 = scmp.le.s32.totalorder 1, %s12
      %p237 = scmp.lt.s32.totalorder %s12, 5
      %p238 = pnand %p236, %p237
      %p239 = pneg %p238
      // Predicated region
      $region66: #{tpu_custom_call.1} parent=5 // pred_check
        _
      $region67: #{tpu_custom_call.1} parent=5 // pred_check_branch
        %241 = sbr.rel (%p238) target = $region69
      $region68: #{tpu_custom_call.1} parent=5 // pred_region
        %s242 = ssub.s32 %s12, 1
        %s243 = sand.u32 %s48, 1
        %s244 = sand.u32 %s48, 1
        %s245 = smul.addr %s244, 20
        %s246 = scalar_lea.vmem [#allocation3], %s245
        // Predicated region
        $region70: #{tpu_custom_call.1} parent=68 // pred_check
          %p247 = pneg %p61
        $region71: #{tpu_custom_call.1} parent=68 // pred_check_branch
          %249 = sbr.rel (%p247) target = $region73
        $region72: #{tpu_custom_call.1} parent=68 // pred_region
          _
        $region73: #{tpu_custom_call.1} parent=68 // pred_fallthru
          _
        %s250 = sand.u32 %s48, 1
        %s251 = sand.u32 %s48, 1
        %s252 = smul.addr %s251, 20
        %s253 = scalar_lea.vmem [#allocation3], %s252
        %p254 = pneg %p61
        %p255 = pneg %p58
        %p256 = scmp.lt.s32.totalorder %s24, 0
        %s257 = scalar_select %p256, %s24, 0
        %s258 = smul.addr %s257, 4
        %s259 = scalar_lea.vmem %s1, %s258
        %p260 = pneg %p87
        %p261 = pneg %p84
        %p262 = pneg %p108
        %p263 = pneg %p105
        %p264 = pneg %p136
        %p265 = pneg %p133
        %s266 = sand.u32 %s123, 1
        %s267 = scalar_lea.sflag [#allocation5], %s266
        %s268 = sand.u32 %s123, 1
        %s269 = smul.addr %s268, 8
        %s270 = scalar_lea.vmem [#allocation4], %s269
        %s271 = smul.u32 5, %s24
        %p272 = scmp.lt.s32.totalorder %s24, 0
        %s273 = scalar_select %p272, %s24, 0
        %s274 = smul.addr %s273, 4
        %s275 = scalar_lea.vmem %s1, %s274
        %p277 = scmp.eq.s32.totalorder %s24, 0
        // Predicated region
        $region74: #{tpu_custom_call.1} parent=68 // pred_check
          %p278 = pneg %p277
        $region75: #{tpu_custom_call.1} parent=68 // pred_check_branch
          %280 = sbr.rel (%p278) target = $region77
        $region76: #{tpu_custom_call.1} parent=68 // pred_region
          %281 = vst [vmem:[#allocation2] sm:$0xff] 0.0
        $region77: #{tpu_custom_call.1} parent=68 // pred_fallthru
          _
        %v282 = vld [vmem:[#allocation2] sm:$0xff]
        %v283 = vld [vmem:[%s275] sm:$0xf]
        %v284 = vld [vmem:[%s246] sm:$0xf]
        %v285 = vld [vmem:[%s246 + $0x4] sm:$0xf]
        %v286 = vld [vmem:[%s246 + $0x8] sm:$0xf]
        %v287 = vld [vmem:[%s246 + $0xc] sm:$0xf]
        %v288 = vld [vmem:[%s246 + $0x10] sm:$0x3]
        %v294 = vunpack.c.l.b16 %v284
        %v295 = vunpack.c.l.b16 %v285
        %v296 = vunpack.c.l.b16 %v286
        %v297 = vunpack.c.l.b16 %v287
        %v298 = vunpack.c.l.b16 %v288
        %v299 = vpack.c.b16 %v295, %v294
        %v300 = vpack.c.b16 %v297, %v296
        %v301 = vpack.c.b16 %v298, %v298
        %vm304 = vcmask 293888
        %v306 = vsel %vm304, %v283, 0
        %vm308 = vcmask 1041408
        %v310 = vsel %vm308, %v301, 0
        %312 = vmatprep.subr.bf16.mxu0 0
        %313 = vmatpush1.bf16.msra.mxu0 0
        %314 = vmatprep.subr.bf16.mxu0 0
        %315 = vmatpush1.bf16.msra.mxu0 0
        %316 = vmatprep.subr.bf16.mxu0 0
        %317 = vmatpush1.bf16.msra.mxu0 0
        %318 = vmatprep.subr.bf16.mxu0 0
        %319 = vmatpush1.bf16.msra.mxu0 0
        %320 = vmatprep.subr.bf16.mxu0 0
        %321 = vmatpush1.bf16.msra.mxu0 0
        %322 = vmatprep.subr.bf16.mxu0 0
        %323 = vmatpush1.bf16.msra.mxu0 %v310
        %324 = vmatprep.subr.bf16.mxu0 0
        %325 = vmatpush1.bf16.msra.mxu0 %v300
        %326 = vmatprep.subr.bf16.mxu0 0
        %327 = vmatpush1.bf16.msra.mxu0 %v299
        %328 = vmatprep.subr.bf16.mxu0 0
        %329 = vmatpush2.bf16.msra.mxu0 0
        %330 = vmatprep.subr.bf16.mxu0 0
        %331 = vmatpush2.bf16.msra.mxu0 0
        %332 = vmatprep.subr.bf16.mxu0 0
        %333 = vmatpush2.bf16.msra.mxu0 0
        %334 = vmatprep.subr.bf16.mxu0 0
        %335 = vmatpush2.bf16.msra.mxu0 0
        %336 = vmatprep.subr.bf16.mxu0 0
        %337 = vmatpush2.bf16.msra.mxu0 0
        %338 = vmatprep.subr.bf16.mxu0 0
        %339 = vmatpush2.bf16.msra.mxu0 0
        %340 = vmatprep.subr.bf16.mxu0 0
        %341 = vmatpush2.bf16.msra.mxu0 0
        %342 = vmatprep.subr.bf16.mxu0 0
        %343 = vmatpush2.bf16.msra.mxu0 0
        %344 = vmatprep.mubr.bf16.mxu0 0
        %345 = vmatmul.mubr.bf16.gmra.mxu0 %v306
        %v346 = vpop.f32.mrf.mxu0
        %v347 = vadd.f32 0.0, %v346
        %v348 = vpop.f32.mrf.mxu0
        %v349 = vpop.f32.mrf.mxu0
        %v350 = vpop.f32.mrf.mxu0
        %351 = vdwg.mxu0
        %v352 = vadd.f32 %v282, %v347
        %353 = vst [vmem:[#allocation2] sm:$0xff] %v352
        // Predicated region
        $region78: #{tpu_custom_call.1} parent=68 // pred_check
          %p354 = pneg %p277
        $region79: #{tpu_custom_call.1} parent=68 // pred_check_branch
          %356 = sbr.rel (%p354) target = $region81
        $region80: #{tpu_custom_call.1} parent=68 // pred_region
          %v357 = vld [vmem:[#allocation2] sm:$0xff]
          %v358 = vld [vmem:[%s2] sm:$0xff]
          %360 = vset.pattern.permute.xlu0 0
          %361 = vperm.xlu0 %360, %v358
          %v362 = vpop.permute.xlu0 %361
          %v364 = vadd.f32 %v357, %v362
          %v365 = vmax.f32 %v364, 0.0
          %366 = vst [vmem:[%s270] sm:$0xff] %v365
        $region81: #{tpu_custom_call.1} parent=68 // pred_fallthru
          _
        %s367 = sand.u32 %s123, 1
        %s368 = scalar_lea.sflag [#allocation5], %s367
        %s369 = sand.u32 %s123, 1
        %s370 = smul.addr %s369, 8
        %s371 = scalar_lea.vmem [#allocation4], %s370
        // Predicated region
        $region82: #{tpu_custom_call.1} parent=68 // pred_check
          %p372 = pneg %p133
        $region83: #{tpu_custom_call.1} parent=68 // pred_check_branch
          %374 = sbr.rel (%p372) target = $region85
        $region84: #{tpu_custom_call.1} parent=68 // pred_region
          %s376 = ssub.s32 128, 128
          %377 = vsyncadd %s368, %s376
          %s378 = smul.addr %s22, 2
          %s379 = sadd.s32 %s23, %s378
          %s380 = smul.addr %s379, 128
          %s381 = scalar_lea.hbm %s3, %s380
          %s383 = sshll.u32 %s371, 4
          %s384 = int_to_ptr.vmem [resolvable:$true] %s383
          %386 = dma.vmem_to_hbm [thread:$0]  %s384, 128, %s381, %s368
        $region85: #{tpu_custom_call.1} parent=68 // pred_fallthru
          _
      $region69: #{tpu_custom_call.1} parent=5 // pred_fallthru
        _
      %p387 = scmp.le.s32.totalorder 2, %s12
      // Predicated region
      $region86: #{tpu_custom_call.1} parent=5 // pred_check
        %p388 = pneg %p387
      $region87: #{tpu_custom_call.1} parent=5 // pred_check_branch
        %390 = sbr.rel (%p388) target = $region89
      $region88: #{tpu_custom_call.1} parent=5 // pred_region
        %s391 = ssub.s32 %s12, 2
        // Predicated region
        $region90: #{tpu_custom_call.1} parent=88 // pred_check
          %p392 = pneg %p139
        $region91: #{tpu_custom_call.1} parent=88 // pred_check_branch
          %394 = sbr.rel (%p392) target = $region93
        $region92: #{tpu_custom_call.1} parent=88 // pred_region
          %s395 = sand.u32 %s124, 1
          %s396 = scalar_lea.sflag [#allocation5], %s395
          %s397 = sand.u32 %s124, 1
          %s398 = smul.addr %s397, 8
          %s399 = scalar_lea.vmem [#allocation4], %s398
          %400 = dma.done %s396, 128
        $region93: #{tpu_custom_call.1} parent=88 // pred_fallthru
          _
      $region89: #{tpu_custom_call.1} parent=5 // pred_fallthru
        _
    $region6: #{tpu_custom_call.1} parent=1 // loop_footer
      %s16 = sadd.s32 1, %s12
    $region7: #{tpu_custom_call.1} parent=1 // loop_footer_branch
      %11 = sbr.rel target = $region3
    $region8: #{tpu_custom_call.1} parent=1 // loop_exit
      _
    %401 = vsyncpa [#allocation5], 1
    %s402 = scalar_lea.sflag [#allocation5], 1
    %403 = vsyncpa %s402, 1

</llo_original>
